<compile_context>
chip_gen: v6e
topology: v6e:2x2x1
jax: 0.10.0
libtpu: 0.0.40
codegen_flags: <defaults>
</compile_context>

<pallas_src>
import jax
import jax.numpy as jnp
from jax.experimental import pallas as pl
from jax.experimental.pallas import tpu as pltpu


def _round_up(x, m):
    return ((x + m - 1) // m) * m


def _tpu_vmem_capacity_bytes():
    """Physical VMEM of the current chip; conservative fallback if unqueryable."""
    try:
        return int(pltpu.get_tpu_info().vmem_capacity_bytes)
    except Exception:
        return 128 * 1024 * 1024  # assume v5e/v6e-class


def _generation_defaults():
    """Per-TPU-generation (tm, tdff, vmem cap, dual-core hint)."""
    vmem = _tpu_vmem_capacity_bytes()
    if vmem <= 64 * 1024 * 1024:
        # v7x-class: 64 MiB/TC VMEM, 2 TCs/chip, 2x256x256 MXU (ridge ~620 fl/B).
        # Cap well below physical so compiler internal scratch still fits.
        return dict(tm=768, tdff=512, vmem_cap=52 * 1024 * 1024, two_cores=True)
    # v5e/v6e: 128 MiB VMEM, 1 TC.  tm=1024 crosses the v6e ridge (~650 fl/B);
    # v5e's ridge (~240 fl/B) is already crossed, the larger tile is just margin.
    return dict(tm=1024, tdff=1024, vmem_cap=100 * 1024 * 1024, two_cores=False)


def _pick_dff_tile(dff, target):
    """Choose (tdff, dff_padded).  Prefers an exact 128-multiple divisor of dff;
    otherwise pads dff up so a bounded-size weight slice always fits VMEM."""
    target = max(128, (target // 128) * 128)
    if dff <= target:
        p = _round_up(dff, 128)
        return p, p
    for t in range(target, 0, -128):
        if dff % t == 0:
            return t, dff
    # No clean divisor <= target: pad dff (padded cols contribute exactly 0).
    return target, _round_up(dff, target)


def _footprint_bytes(tm_e, tdff_e, d_model, isz, osz):
    """Estimated VMEM footprint (double-buffered streamed operands + scratch)."""
    return (2 * tm_e * d_model * isz            # x tile
            + 2 * d_model * tdff_e * isz        # W1 slice
            + 2 * tdff_e * d_model * isz        # W2 slice
            + 2 * tdff_e * 4 + 2 * d_model * 4  # bias slices (f32)
            + 2 * tm_e * d_model * osz          # output tile
            + tm_e * d_model * 4                # f32 accumulator scratch
            + tm_e * tdff_e * 4)                # f32 intermediate h


def ffn_kernel(x_ref, w1_ref, b1_ref, w2_ref, b2_ref, o_ref, acc_ref):
    """One (m, k) grid step: m parallel over row tiles, k reduces over dff."""
    k = pl.program_id(1)

    # (tm, d_model) @ (d_model, tdff) -> f32 (tm, tdff) on the MXU.
    h = jnp.dot(x_ref[...], w1_ref[...], preferred_element_type=jnp.float32)
    # Bias slice + ReLU on the VPU.  Dropout == identity (inference mode).
    h = jnp.maximum(h + b1_ref[...], 0.0)
    partial = jnp.dot(h.astype(w2_ref.dtype), w2_ref[...],
                      preferred_element_type=jnp.float32)

    # First k step writes directly (no zero-init + read-modify-write).
    @pl.when(k == 0)
    def _first():
        acc_ref[...] = partial

    @pl.when(k > 0)
    def _accumulate():
        acc_ref[...] += partial

    @pl.when(k == pl.num_programs(1) - 1)
    def _finalize():
        # b2 applied exactly once, in the epilogue, then downcast.
        o_ref[...] = (acc_ref[...] + b2_ref[...]).astype(o_ref.dtype)


def feed_forward_network(x, w1, b1, w2, b2, *, tm=None, tdff=None,
                         compute_dtype=jnp.bfloat16):
    """x: [B, S, d_model]; w1: [d_model, dff]; b1: [dff]; w2: [dff, d_model]; b2: [d_model].

    compute_dtype defaults to bf16 (full-rate MXU, half the weight-stream bytes);
    pass jnp.float32 explicitly for debugging.  Store weights in compute_dtype
    upstream so the wrapper's cast is a no-op.
    """
    B, S, d_model = x.shape
    dff = w1.shape[1]
    out_dtype = x.dtype

    gen = _generation_defaults()
    if tm is None:
        tm = gen["tm"]
    if tdff is None:
        tdff = gen["tdff"]
    vmem_cap = gen["vmem_cap"]

    isz = jnp.dtype(compute_dtype).itemsize
    osz = jnp.dtype(out_dtype).itemsize

    M = B * S
    tdff_eff, dff_pad = _pick_dff_tile(dff, tdff)

    # Row tile: MXU-filling at large M, no absurd padding at tiny M.
    tm_eff = min(tm, _round_up(M, 8))
    # v7x decode-sized batches: split rows so both TensorCores get an m tile.
    if gen["two_cores"] and 16 < M <= tm:
        tm_eff = _round_up(-(-M // 2), 8)
    # Shrink the row tile if the footprint would overflow the per-generation
    # VMEM budget (e.g. very large d_model on v7x).
    while tm_eff > 256 and _footprint_bytes(tm_eff, tdff_eff, d_model, isz, osz) > vmem_cap:
        tm_eff = max(256, _round_up(tm_eff // 2, 8))

    M_pad = _round_up(M, tm_eff)
    grid = (M_pad // tm_eff, dff_pad // tdff_eff)

    # --- Operand preparation (cheap at these sizes; production should store the
    # weights pre-cast/pre-padded so none of these copies happen per call). ---
    x2 = x.reshape(M, d_model)
    if x2.dtype != compute_dtype:
        x2 = x2.astype(compute_dtype)
    if M_pad != M:
        # TODO(synk): replace with a cdiv grid + masked row bound to avoid the
        # extra activation pass; second-order at large M.
        x2 = jnp.pad(x2, ((0, M_pad - M), (0, 0)))

    w1c = w1 if w1.dtype == compute_dtype else w1.astype(compute_dtype)
    w2c = w2 if w2.dtype == compute_dtype else w2.astype(compute_dtype)
    b1_2 = b1.reshape(1, dff).astype(jnp.float32)      # biases stay f32
    b2_2 = b2.reshape(1, d_model).astype(jnp.float32)
    if dff_pad != dff:
        w1c = jnp.pad(w1c, ((0, 0), (0, dff_pad - dff)))
        w2c = jnp.pad(w2c, ((0, dff_pad - dff), (0, 0)))
        b1_2 = jnp.pad(b1_2, ((0, 0), (0, dff_pad - dff)))

    footprint = _footprint_bytes(tm_eff, tdff_eff, d_model, isz, osz)
    vmem_limit = min(max(int(1.25 * footprint), 16 * 1024 * 1024), vmem_cap)

    flops = 4 * M_pad * d_model * dff_pad  # two matmuls, fwd only
    bytes_accessed = int(
        M_pad * d_model * (isz + osz)                       # read x, write out
        + grid[0] * 2 * d_model * dff_pad * isz             # weights per m tile
        + (dff_pad + d_model) * 4)                          # biases
    cost = pl.CostEstimate(flops=flops, transcendentals=0,
                           bytes_accessed=bytes_accessed)

    out2 = pl.pallas_call(
        ffn_kernel,
        out_shape=jax.ShapeDtypeStruct((M_pad, d_model), out_dtype),
        grid_spec=pltpu.PrefetchScalarGridSpec(
            num_scalar_prefetch=0,
            grid=grid,
            in_specs=[
                pl.BlockSpec((tm_eff, d_model), lambda i, k: (i, 0)),    # x rows
                pl.BlockSpec((d_model, tdff_eff), lambda i, k: (0, k)),  # W1 dff slice
                pl.BlockSpec((1, tdff_eff), lambda i, k: (0, k)),        # b1 dff slice
                pl.BlockSpec((tdff_eff, d_model), lambda i, k: (k, 0)),  # W2 dff slice
                pl.BlockSpec((1, d_model), lambda i, k: (0, 0)),         # b2 (resident)
            ],
            out_specs=pl.BlockSpec((tm_eff, d_model), lambda i, k: (i, 0)),
            scratch_shapes=[pltpu.VMEM((tm_eff, d_model), jnp.float32)],
        ),
        compiler_params=pltpu.CompilerParams(
            dimension_semantics=("parallel", "arbitrary"),
            vmem_limit_bytes=vmem_limit),
        cost_estimate=cost,
    )(x2, w1c, b1_2, w2c, b2_2)

    return out2[:M].reshape(B, S, d_model)


if __name__ == "__main__":
    # Small shapes: batch=2, seq=8, d_model=32, dim_feedforward=64.
    B, S, d_model, dff = 2, 8, 32, 64

    key = jax.random.PRNGKey(0)
    kx, kw1, kb1, kw2, kb2 = jax.random.split(key, 5)

    x = jax.random.normal(kx, (B, S, d_model), dtype=jnp.float32)
    # Deterministic synthetic parameters (weights stored as [in, out]).
    w1 = jax.random.normal(kw1, (d_model, dff), dtype=jnp.float32) * 0.05
    b1 = jax.random.normal(kb1, (dff,), dtype=jnp.float32) * 0.05
    w2 = jax.random.normal(kw2, (dff, d_model), dtype=jnp.float32) * 0.05
    b2 = jax.random.normal(kb2, (d_model,), dtype=jnp.float32) * 0.05

    # Pure-JAX reference of the same (inference-mode) semantics.
    ref = jnp.maximum(x.reshape(-1, d_model) @ w1 + b1, 0.0) @ w2 + b2
    ref = ref.reshape(B, S, d_model)

    # f32 compute path (explicit debug opt-in; matches reference tightly).
    out = feed_forward_network(x, w1, b1, w2, b2, compute_dtype=jnp.float32)
    out = jax.block_until_ready(out)
    assert jnp.allclose(out, ref, atol=1e-5, rtol=1e-5), "f32 mismatch vs reference"

    # bf16 compute path (production default): weights pre-cast UPSTREAM so the
    # per-call cast in the wrapper is a no-op; loose tolerance.
    w1_bf16, w2_bf16 = w1.astype(jnp.bfloat16), w2.astype(jnp.bfloat16)
    out_bf16 = feed_forward_network(x, w1_bf16, b1, w2_bf16, b2)
    out_bf16 = jax.block_until_ready(out_bf16)
    assert jnp.allclose(out_bf16, ref, atol=5e-2, rtol=5e-2), "bf16 mismatch vs reference"

    print("KERNEL_OK")
</pallas_src>

<mosaic_0001>
module attributes {stable_mosaic.version = 11 : i64} {
  func.func @ffn_kernel(%arg0: i32, %arg1: i32, %arg2: memref<16x32xf32, #tpu.memory_space<vmem>>, %arg3: memref<32x128xf32, #tpu.memory_space<vmem>>, %arg4: memref<1x128xf32, #tpu.memory_space<vmem>>, %arg5: memref<128x32xf32, #tpu.memory_space<vmem>>, %arg6: memref<1x32xf32, #tpu.memory_space<vmem>>, %arg7: memref<16x32xf32, #tpu.memory_space<vmem>>, %arg8: memref<16x32xf32, #tpu.memory_space<vmem>>) attributes {dimension_semantics = [#tpu.dimension_semantics<parallel>, #tpu.dimension_semantics<arbitrary>], iteration_bounds = array<i64: 1, 1>, scalar_prefetch = 0 : i64, scratch_operands = 1 : i64, tpu.core_type = #tpu.core_type<tc>, window_params = [{transform_indices = @transform_0, window_bounds = array<i64: 16, 32>}, {transform_indices = @transform_1, window_bounds = array<i64: 32, 128>}, {transform_indices = @transform_2, window_bounds = array<i64: 1, 128>}, {transform_indices = @transform_3, window_bounds = array<i64: 128, 32>}, {pipeline_mode = #tpu.pipeline_mode<synchronous>, transform_indices = @transform_4, window_bounds = array<i64: 1, 32>}, {transform_indices = @transform_5, window_bounds = array<i64: 16, 32>}]} {
    %c0 = arith.constant 0 : index
    %c0_0 = arith.constant 0 : index
    %0 = vector.load %arg2[%c0, %c0_0] : memref<16x32xf32, #tpu.memory_space<vmem>>, vector<16x32xf32>
    %c0_1 = arith.constant 0 : index
    %c0_2 = arith.constant 0 : index
    %1 = vector.load %arg3[%c0_1, %c0_2] : memref<32x128xf32, #tpu.memory_space<vmem>>, vector<32x128xf32>
    %cst = arith.constant dense<0.000000e+00> : vector<16x128xf32>
    %2 = tpu.matmul %0, %1, %cst {dimension_numbers = #tpu.dot_dimension_numbers<[1], [0], [0], [1], [0, 0, 1, 1], [], []>} : vector<16x32xf32>, vector<32x128xf32>, vector<16x128xf32> -> vector<16x128xf32>
    %c0_3 = arith.constant 0 : index
    %c0_4 = arith.constant 0 : index
    %3 = vector.load %arg4[%c0_3, %c0_4] : memref<1x128xf32, #tpu.memory_space<vmem>>, vector<1x128xf32>
    %4 = vector.broadcast %3 : vector<1x128xf32> to vector<16x128xf32>
    %5 = arith.addf %2, %4 : vector<16x128xf32>
    %cst_5 = arith.constant 0.000000e+00 : f32
    %6 = vector.broadcast %cst_5 : f32 to vector<16x128xf32>
    %7 = arith.maximumf %5, %6 : vector<16x128xf32>
    %c0_6 = arith.constant 0 : index
    %c0_7 = arith.constant 0 : index
    %8 = vector.load %arg5[%c0_6, %c0_7] : memref<128x32xf32, #tpu.memory_space<vmem>>, vector<128x32xf32>
    %cst_8 = arith.constant dense<0.000000e+00> : vector<16x32xf32>
    %9 = tpu.matmul %7, %8, %cst_8 {dimension_numbers = #tpu.dot_dimension_numbers<[1], [0], [0], [1], [0, 0, 1, 1], [], []>} : vector<16x128xf32>, vector<128x32xf32>, vector<16x32xf32> -> vector<16x32xf32>
    %c0_i32 = arith.constant 0 : i32
    %10 = arith.cmpi eq, %arg1, %c0_i32 : i32
    %11 = arith.extui %10 : i1 to i32
    %c0_i32_9 = arith.constant 0 : i32
    %12 = arith.cmpi ne, %11, %c0_i32_9 : i32
    scf.if %12 {
      %c0_14 = arith.constant 0 : index
      %c0_15 = arith.constant 0 : index
      %19 = vector.load %arg8[%c0_14, %c0_15] : memref<16x32xf32, #tpu.memory_space<vmem>>, vector<16x32xf32>
      tpu.vector_store %arg8[%c0_14, %c0_15], %9 {strides = array<i32>} : memref<16x32xf32, #tpu.memory_space<vmem>>, vector<16x32xf32>,
    } else {
    }
    %c0_i32_10 = arith.constant 0 : i32
    %13 = arith.cmpi sgt, %arg1, %c0_i32_10 : i32
    %14 = arith.extui %13 : i1 to i32
    %c0_i32_11 = arith.constant 0 : i32
    %15 = arith.cmpi ne, %14, %c0_i32_11 : i32
    scf.if %15 {
      %c0_14 = arith.constant 0 : index
      %c0_15 = arith.constant 0 : index
      %19 = vector.load %arg8[%c0_14, %c0_15] : memref<16x32xf32, #tpu.memory_space<vmem>>, vector<16x32xf32>
      %20 = arith.addf %19, %9 : vector<16x32xf32>
      %c0_16 = arith.constant 0 : index
      %c0_17 = arith.constant 0 : index
      %21 = vector.load %arg8[%c0_16, %c0_17] : memref<16x32xf32, #tpu.memory_space<vmem>>, vector<16x32xf32>
      tpu.vector_store %arg8[%c0_16, %c0_17], %20 {strides = array<i32>} : memref<16x32xf32, #tpu.memory_space<vmem>>, vector<16x32xf32>,
    } else {
    }
    %c0_i32_12 = arith.constant 0 : i32
    %16 = arith.cmpi eq, %arg1, %c0_i32_12 : i32
    %17 = arith.extui %16 : i1 to i32
    %c0_i32_13 = arith.constant 0 : i32
    %18 = arith.cmpi ne, %17, %c0_i32_13 : i32
    scf.if %18 {
      %c0_14 = arith.constant 0 : index
      %c0_15 = arith.constant 0 : index
      %19 = vector.load %arg8[%c0_14, %c0_15] : memref<16x32xf32, #tpu.memory_space<vmem>>, vector<16x32xf32>
      %c0_16 = arith.constant 0 : index
      %c0_17 = arith.constant 0 : index
      %20 = vector.load %arg6[%c0_16, %c0_17] : memref<1x32xf32, #tpu.memory_space<vmem>>, vector<1x32xf32>
      %21 = vector.broadcast %20 : vector<1x32xf32> to vector<16x32xf32>
      %22 = arith.addf %19, %21 : vector<16x32xf32>
      %c0_18 = arith.constant 0 : index
      %c0_19 = arith.constant 0 : index
      %23 = vector.load %arg7[%c0_18, %c0_19] : memref<16x32xf32, #tpu.memory_space<vmem>>, vector<16x32xf32>
      tpu.vector_store %arg7[%c0_18, %c0_19], %22 {strides = array<i32>} : memref<16x32xf32, #tpu.memory_space<vmem>>, vector<16x32xf32>,
    } else {
    }
    return
  }
  func.func @transform_0(%arg0: i32, %arg1: i32) -> (i32, i32) {
    %c0_i32 = arith.constant 0 : i32
    %c0_i32_0 = arith.constant 0 : i32
    return %arg0, %c0_i32 : i32, i32
  }
  func.func @transform_1(%arg0: i32, %arg1: i32) -> (i32, i32) {
    %c0_i32 = arith.constant 0 : i32
    %c0_i32_0 = arith.constant 0 : i32
    return %c0_i32, %arg1 : i32, i32
  }
  func.func @transform_2(%arg0: i32, %arg1: i32) -> (i32, i32) {
    %c0_i32 = arith.constant 0 : i32
    %c0_i32_0 = arith.constant 0 : i32
    return %c0_i32, %arg1 : i32, i32
  }
  func.func @transform_3(%arg0: i32, %arg1: i32) -> (i32, i32) {
    %c0_i32 = arith.constant 0 : i32
    %c0_i32_0 = arith.constant 0 : i32
    return %arg1, %c0_i32 : i32, i32
  }
  func.func @transform_4(%arg0: i32, %arg1: i32) -> (i32, i32) {
    %c0_i32 = arith.constant 0 : i32
    %c0_i32_0 = arith.constant 0 : i32
    %c0_i32_1 = arith.constant 0 : i32
    return %c0_i32, %c0_i32_0 : i32, i32
  }
  func.func @transform_5(%arg0: i32, %arg1: i32) -> (i32, i32) {
    %c0_i32 = arith.constant 0 : i32
    %c0_i32_0 = arith.constant 0 : i32
    return %arg0, %c0_i32 : i32, i32
  }
}

</mosaic_0001>

<llo_original>
// kernel: tpu_custom_call.1
$region0: #{tpu_custom_call.1}
  #allocation0 [shape = 'u32[]', space=smem, size = 0x4, offset = 0x4, fixed_abs, tag = 'smem constant byte address 0x4 - core index']
  #allocation1 [shape = 'u32[144,128]{1,0:T(1,128)}', space=vmem, size = 0x12000, scoped, tag = 'internal scratch']
  #allocation2 [shape = 'f32[16,32]{1,0:T(8,128)}', space=vmem, size = 0x2000, scoped, tag = 'scratch operand']
  %s0 = inlined_call_operand.vmem [shape: f32[16,32], index: 0, kind: input, shape index: {}]
  %s1 = inlined_call_operand.vmem [shape: f32[32,128], index: 1, kind: input, shape index: {}]
  %s2 = inlined_call_operand.vmem [shape: f32[1,128], index: 2, kind: input, shape index: {}]
  %s3 = inlined_call_operand.vmem [shape: f32[128,32], index: 3, kind: input, shape index: {}]
  %s4 = inlined_call_operand.vmem [shape: f32[1,32], index: 4, kind: input, shape index: {}]
  %s5 = inlined_call_operand.hbm [shape: f32[16,32], index: 5, kind: output, shape index: {}]
  %s6 = sld [smem:[#allocation0]]
  $region42: #{tpu_custom_call.1} parent=0
    _
  %s8 = ssub.s32 1, %s6
  %s9 = scalar_select 0, %s8, %s6
  $region1: #{tpu_custom_call.1} parent=0
    #allocation3 [shape = 'u8[8192]{0}', space=vmem, size = 0x2000, scoped, tag = 'output window, operand 0, single buffered']
    #allocation4 [shape = 's32[1]{0}', space=sflag, size = 0x4, scoped, tag = 'scoped memory for tpu_custom_call.1']
    %10 = vsyncpa [#allocation4], 0
    // Predicated region
    $region2: #{tpu_custom_call.1} parent=1 // pred_check
      _
    $region3: #{tpu_custom_call.1} parent=1 // pred_check_branch
      %12 = sbr.rel (0) target = $region5
    $region4: #{tpu_custom_call.1} parent=1 // pred_region
      _
    $region5: #{tpu_custom_call.1} parent=1 // pred_fallthru
      _
    // Predicated region
    $region6: #{tpu_custom_call.1} parent=1 // pred_check
      _
    $region7: #{tpu_custom_call.1} parent=1 // pred_check_branch
      %14 = sbr.rel (0) target = $region9
    $region8: #{tpu_custom_call.1} parent=1 // pred_region
      _
    $region9: #{tpu_custom_call.1} parent=1 // pred_fallthru
      _
    // Predicated region
    $region10: #{tpu_custom_call.1} parent=1 // pred_check
      _
    $region11: #{tpu_custom_call.1} parent=1 // pred_check_branch
      %16 = sbr.rel (0) target = $region13
    $region12: #{tpu_custom_call.1} parent=1 // pred_region
      _
    $region13: #{tpu_custom_call.1} parent=1 // pred_fallthru
      _
    // Predicated region
    $region14: #{tpu_custom_call.1} parent=1 // pred_check
      _
    $region15: #{tpu_custom_call.1} parent=1 // pred_check_branch
      %18 = sbr.rel (0) target = $region17
    $region16: #{tpu_custom_call.1} parent=1 // pred_region
      _
    $region17: #{tpu_custom_call.1} parent=1 // pred_fallthru
      _
    // Predicated region
    $region18: #{tpu_custom_call.1} parent=1 // pred_check
      _
    $region19: #{tpu_custom_call.1} parent=1 // pred_check_branch
      %20 = sbr.rel (0) target = $region21
    $region20: #{tpu_custom_call.1} parent=1 // pred_region
      _
    $region21: #{tpu_custom_call.1} parent=1 // pred_fallthru
      _
    %v21 = vld [vmem:[%s0] sm:$0xff]
    %v22 = vld [vmem:[%s0 + $0x8] sm:$0xff]
    %v23 = vld [vmem:[%s1] sm:$0xff]
    %v24 = vld [vmem:[%s1 + $0x8] sm:$0xff]
    %v25 = vld [vmem:[%s1 + $0x10] sm:$0xff]
    %v26 = vld [vmem:[%s1 + $0x18] sm:$0xff]
    %v27 = vld [vmem:[%s2] sm:$0x1]
    %v29 = vlaneseq
    %v30 = vshrl.u32 %v29, 7
    %v31 = vsub.s32 0, %v30
    %v32 = vrot.slane %v27, %v31
    %vm34 = vcmask 261120
    %v36 = vsel %vm34, %v21, 0
    %v39 = vsel %vm34, %v22, 0
    %41 = vmatprep.subr.mxu0 0.0
    %42 = vmatpush1.msra.mxu0 0.0
    %43 = vmatprep.subr.mxu0 0.0
    %44 = vmatpush1.msra.mxu0 0.0
    %45 = vmatprep.subr.mxu0 0.0
    %46 = vmatpush1.msra.mxu0 0.0
    %47 = vmatprep.subr.mxu0 0.0
    %48 = vmatpush1.msra.mxu0 0.0
    %49 = vmatprep.subr.mxu0 0.0
    %50 = vmatpush1.msra.mxu0 0.0
    %51 = vmatprep.subr.mxu0 0.0
    %52 = vmatpush1.msra.mxu0 0.0
    %53 = vmatprep.subr.mxu0 0.0
    %54 = vmatpush1.msra.mxu0 0.0
    %55 = vmatprep.subr.mxu0 0.0
    %56 = vmatpush1.msra.mxu0 0.0
    %57 = vmatprep.subr.mxu0 0.0
    %58 = vmatpush1.msra.mxu0 0.0
    %59 = vmatprep.subr.mxu0 0.0
    %60 = vmatpush1.msra.mxu0 0.0
    %61 = vmatprep.subr.mxu0 0.0
    %62 = vmatpush1.msra.mxu0 0.0
    %63 = vmatprep.subr.mxu0 0.0
    %64 = vmatpush1.msra.mxu0 0.0
    %65 = vmatprep.subr.mxu0 0.0
    %66 = vmatpush1.msra.mxu0 %v26
    %67 = vmatprep.subr.mxu0 0.0
    %68 = vmatpush1.msra.mxu0 %v25
    %69 = vmatprep.subr.mxu0 0.0
    %70 = vmatpush1.msra.mxu0 %v24
    %71 = vmatprep.subr.mxu0 0.0
    %72 = vmatpush1.msra.mxu0 %v23
    %73 = vmatprep.subr.mxu0 0.0
    %74 = vmatpush2.msra.mxu0 0.0
    %75 = vmatprep.subr.mxu0 0.0
    %76 = vmatpush2.msra.mxu0 0.0
    %77 = vmatprep.subr.mxu0 0.0
    %78 = vmatpush2.msra.mxu0 0.0
    %79 = vmatprep.subr.mxu0 0.0
    %80 = vmatpush2.msra.mxu0 0.0
    %81 = vmatprep.subr.mxu0 0.0
    %82 = vmatpush2.msra.mxu0 0.0
    %83 = vmatprep.subr.mxu0 0.0
    %84 = vmatpush2.msra.mxu0 0.0
    %85 = vmatprep.subr.mxu0 0.0
    %86 = vmatpush2.msra.mxu0 0.0
    %87 = vmatprep.subr.mxu0 0.0
    %88 = vmatpush2.msra.mxu0 0.0
    %89 = vmatprep.subr.mxu0 0.0
    %90 = vmatpush2.msra.mxu0 0.0
    %91 = vmatprep.subr.mxu0 0.0
    %92 = vmatpush2.msra.mxu0 0.0
    %93 = vmatprep.subr.mxu0 0.0
    %94 = vmatpush2.msra.mxu0 0.0
    %95 = vmatprep.subr.mxu0 0.0
    %96 = vmatpush2.msra.mxu0 0.0
    %97 = vmatprep.subr.mxu0 0.0
    %98 = vmatpush2.msra.mxu0 0.0
    %99 = vmatprep.subr.mxu0 0.0
    %100 = vmatpush2.msra.mxu0 0.0
    %101 = vmatprep.subr.mxu0 0.0
    %102 = vmatpush2.msra.mxu0 0.0
    %103 = vmatprep.subr.mxu0 0.0
    %104 = vmatpush2.msra.mxu0 0.0
    %105 = vmatprep.mubr.f32.mxu0 0.0
    %106 = vmatmul.mubr.f32.gmra.mxu0 %v36
    %v107 = vpop.f32.mrf.mxu0
    %v108 = vadd.f32 %v32, %v107
    %v109 = vpop.f32.mrf.mxu0
    %110 = vmatprep.mubr.f32.mxu0 0.0
    %111 = vmatmul.mubr.f32.gmra.mxu0 %v39
    %v112 = vpop.f32.mrf.mxu0
    %v113 = vadd.f32 %v32, %v112
    %v114 = vpop.f32.mrf.mxu0
    %115 = vdwg.mxu0
    %v116 = vmax.f32 %v108, 0.0
    %v117 = vmax.f32 %v113, 0.0
    %v118 = vld [vmem:[%s3] sm:$0xff]
    %v119 = vld [vmem:[%s3 + $0x8] sm:$0xff]
    %v120 = vld [vmem:[%s3 + $0x10] sm:$0xff]
    %v121 = vld [vmem:[%s3 + $0x18] sm:$0xff]
    %v122 = vld [vmem:[%s3 + $0x20] sm:$0xff]
    %v123 = vld [vmem:[%s3 + $0x28] sm:$0xff]
    %v124 = vld [vmem:[%s3 + $0x30] sm:$0xff]
    %v125 = vld [vmem:[%s3 + $0x38] sm:$0xff]
    %v126 = vld [vmem:[%s3 + $0x40] sm:$0xff]
    %v127 = vld [vmem:[%s3 + $0x48] sm:$0xff]
    %v128 = vld [vmem:[%s3 + $0x50] sm:$0xff]
    %v129 = vld [vmem:[%s3 + $0x58] sm:$0xff]
    %v130 = vld [vmem:[%s3 + $0x60] sm:$0xff]
    %v131 = vld [vmem:[%s3 + $0x68] sm:$0xff]
    %v132 = vld [vmem:[%s3 + $0x70] sm:$0xff]
    %v133 = vld [vmem:[%s3 + $0x78] sm:$0xff]
    %134 = vmatprep.subr.mxu0 0.0
    %135 = vmatpush1.msra.mxu0 %v133
    %136 = vmatprep.subr.mxu0 0.0
    %137 = vmatpush1.msra.mxu0 %v132
    %138 = vmatprep.subr.mxu0 0.0
    %139 = vmatpush1.msra.mxu0 %v131
    %140 = vmatprep.subr.mxu0 0.0
    %141 = vmatpush1.msra.mxu0 %v130
    %142 = vmatprep.subr.mxu0 0.0
    %143 = vmatpush1.msra.mxu0 %v129
    %144 = vmatprep.subr.mxu0 0.0
    %145 = vmatpush1.msra.mxu0 %v128
    %146 = vmatprep.subr.mxu0 0.0
    %147 = vmatpush1.msra.mxu0 %v127
    %148 = vmatprep.subr.mxu0 0.0
    %149 = vmatpush1.msra.mxu0 %v126
    %150 = vmatprep.subr.mxu0 0.0
    %151 = vmatpush1.msra.mxu0 %v125
    %152 = vmatprep.subr.mxu0 0.0
    %153 = vmatpush1.msra.mxu0 %v124
    %154 = vmatprep.subr.mxu0 0.0
    %155 = vmatpush1.msra.mxu0 %v123
    %156 = vmatprep.subr.mxu0 0.0
    %157 = vmatpush1.msra.mxu0 %v122
    %158 = vmatprep.subr.mxu0 0.0
    %159 = vmatpush1.msra.mxu0 %v121
    %160 = vmatprep.subr.mxu0 0.0
    %161 = vmatpush1.msra.mxu0 %v120
    %162 = vmatprep.subr.mxu0 0.0
    %163 = vmatpush1.msra.mxu0 %v119
    %164 = vmatprep.subr.mxu0 0.0
    %165 = vmatpush1.msra.mxu0 %v118
    %166 = vmatprep.subr.mxu0 0.0
    %167 = vmatpush2.msra.mxu0 0.0
    %168 = vmatprep.subr.mxu0 0.0
    %169 = vmatpush2.msra.mxu0 0.0
    %170 = vmatprep.subr.mxu0 0.0
    %171 = vmatpush2.msra.mxu0 0.0
    %172 = vmatprep.subr.mxu0 0.0
    %173 = vmatpush2.msra.mxu0 0.0
    %174 = vmatprep.subr.mxu0 0.0
    %175 = vmatpush2.msra.mxu0 0.0
    %176 = vmatprep.subr.mxu0 0.0
    %177 = vmatpush2.msra.mxu0 0.0
    %178 = vmatprep.subr.mxu0 0.0
    %179 = vmatpush2.msra.mxu0 0.0
    %180 = vmatprep.subr.mxu0 0.0
    %181 = vmatpush2.msra.mxu0 0.0
    %182 = vmatprep.subr.mxu0 0.0
    %183 = vmatpush2.msra.mxu0 0.0
    %184 = vmatprep.subr.mxu0 0.0
    %185 = vmatpush2.msra.mxu0 0.0
    %186 = vmatprep.subr.mxu0 0.0
    %187 = vmatpush2.msra.mxu0 0.0
    %188 = vmatprep.subr.mxu0 0.0
    %189 = vmatpush2.msra.mxu0 0.0
    %190 = vmatprep.subr.mxu0 0.0
    %191 = vmatpush2.msra.mxu0 0.0
    %192 = vmatprep.subr.mxu0 0.0
    %193 = vmatpush2.msra.mxu0 0.0
    %194 = vmatprep.subr.mxu0 0.0
    %195 = vmatpush2.msra.mxu0 0.0
    %196 = vmatprep.subr.mxu0 0.0
    %197 = vmatpush2.msra.mxu0 0.0
    %198 = vmatprep.mubr.f32.mxu0 0.0
    %199 = vmatmul.mubr.f32.gmra.mxu0 %v116
    %v200 = vpop.f32.mrf.mxu0
    %v201 = vadd.f32 0.0, %v200
    %v202 = vpop.f32.mrf.mxu0
    %203 = vmatprep.mubr.f32.mxu0 0.0
    %204 = vmatmul.mubr.f32.gmra.mxu0 %v117
    %v205 = vpop.f32.mrf.mxu0
    %v206 = vadd.f32 0.0, %v205
    %v207 = vpop.f32.mrf.mxu0
    %208 = vdwg.mxu0
    %p209 = scmp.eq.s32.totalorder 0, 0
    // Predicated region
    $region22: #{tpu_custom_call.1} parent=1 // pred_check
      %p210 = pneg %p209
    $region23: #{tpu_custom_call.1} parent=1 // pred_check_branch
      %212 = sbr.rel (%p210) target = $region25
    $region24: #{tpu_custom_call.1} parent=1 // pred_region
      %213 = vst.msk [vmem:[#allocation2] sm:$0xff] %vm34, %v201
      %214 = vst.msk [vmem:[#allocation2 + $0x8] sm:$0xff] %vm34, %v206
    $region25: #{tpu_custom_call.1} parent=1 // pred_fallthru
      _
    %p215 = scmp.gt.s32.totalorder 0, 0
    // Predicated region
    $region26: #{tpu_custom_call.1} parent=1 // pred_check
      %p216 = pneg %p215
    $region27: #{tpu_custom_call.1} parent=1 // pred_check_branch
      %218 = sbr.rel (%p216) target = $region29
    $region28: #{tpu_custom_call.1} parent=1 // pred_region
      %v219 = vld [vmem:[#allocation2] sm:$0xff]
      %v220 = vld [vmem:[#allocation2 + $0x8] sm:$0xff]
      %v221 = vadd.f32 %v219, %v201
      %v222 = vadd.f32 %v220, %v206
      %223 = vst.msk [vmem:[#allocation2] sm:$0xff] %vm34, %v221
      %224 = vst.msk [vmem:[#allocation2 + $0x8] sm:$0xff] %vm34, %v222
    $region29: #{tpu_custom_call.1} parent=1 // pred_fallthru
      _
    // Predicated region
    $region30: #{tpu_custom_call.1} parent=1 // pred_check
      %p225 = pneg %p209
    $region31: #{tpu_custom_call.1} parent=1 // pred_check_branch
      %227 = sbr.rel (%p225) target = $region33
    $region32: #{tpu_custom_call.1} parent=1 // pred_region
      %v228 = vld [vmem:[#allocation2] sm:$0xff]
      %v229 = vld [vmem:[#allocation2 + $0x8] sm:$0xff]
      %v230 = vld [vmem:[%s4] sm:$0x1]
      %v232 = vlaneseq
      %v233 = vshrl.u32 %v232, 7
      %v234 = vsub.s32 0, %v233
      %v235 = vrot.slane %v230, %v234
      %v237 = vadd.f32 %v228, %v235
      %v238 = vadd.f32 %v229, %v235
      %239 = vst.msk [vmem:[#allocation3] sm:$0xff] %vm34, %v237
      %240 = vst.msk [vmem:[#allocation3 + $0x8] sm:$0xff] %vm34, %v238
    $region33: #{tpu_custom_call.1} parent=1 // pred_fallthru
      _
    // Predicated region
    $region34: #{tpu_custom_call.1} parent=1 // pred_check
      _
    $region35: #{tpu_custom_call.1} parent=1 // pred_check_branch
      %242 = sbr.rel (0) target = $region37
    $region36: #{tpu_custom_call.1} parent=1 // pred_region
      %s244 = ssub.s32 256, 256
      %245 = vsyncadd [#allocation4], %s244
      %s246 = sshll.u32 [#allocation3], 4
      %s247 = int_to_ptr.vmem [resolvable:$true] %s246
      %252 = dma.vmem_to_hbm [thread:$0]  %s247, 256, %s5, [#allocation4], 128, 128, 8
    $region37: #{tpu_custom_call.1} parent=1 // pred_fallthru
      _
    // Predicated region
    $region38: #{tpu_custom_call.1} parent=1 // pred_check
      _
    $region39: #{tpu_custom_call.1} parent=1 // pred_check_branch
      %254 = sbr.rel (0) target = $region41
    $region40: #{tpu_custom_call.1} parent=1 // pred_region
      %255 = dma.done [#allocation4], 256
    $region41: #{tpu_custom_call.1} parent=1 // pred_fallthru
      _
    %256 = vsyncpa [#allocation4], 1

</llo_original>
